<compile_context>
chip_gen: v7x
topology: tpu7x:2x2x1
jax: 0.10.0
libtpu: 0.0.40
codegen_flags: <defaults>
</compile_context>

<pallas_src>
import functools

import jax
import jax.numpy as jnp
from jax.experimental import pallas as pl
from jax.experimental.pallas import tpu as pltpu


# ----------------------------- Pallas kernel --------------------------------
def _sac_critic_kernel(*refs, num_parts, has_q_bound):
    idx = 0
    if has_q_bound:
        qb_ref = refs[0]          # SMEM (2,) f32: [center, range]
        idx = 1
    x_refs = refs[idx:idx + num_parts]                       # (TB, feat_i)
    w1_refs = refs[idx + num_parts:idx + 2 * num_parts]      # (feat_i, 256)
    b1_ref, w2_ref, b2_ref, w3_ref, b3_ref, o_ref = refs[idx + 2 * num_parts:]

    # Layer 1: fused "concat" -> sum of per-segment MXU matmuls, f32 accumulate.
    h1 = jnp.dot(x_refs[0][...].astype(w1_refs[0].dtype), w1_refs[0][...],
                 preferred_element_type=jnp.float32)
    for x_r, w_r in zip(x_refs[1:], w1_refs[1:]):
        h1 += jnp.dot(x_r[...].astype(w_r.dtype), w_r[...],
                      preferred_element_type=jnp.float32)
    h1 = jnp.maximum(h1 + b1_ref[...], 0.0)

    # Layer 2: (TB, 256) @ (256, 256) + bias -> ReLU.
    h2 = jnp.dot(h1.astype(w2_ref.dtype), w2_ref[...],
                 preferred_element_type=jnp.float32)
    h2 = jnp.maximum(h2 + b2_ref[...], 0.0)

    # Layer 3: N=1 -> VPU multiply + XLU lane-reduce instead of an MXU pass.
    q = jnp.sum(h2 * w3_ref[...], axis=-1, keepdims=True) + b3_ref[...]

    if has_q_bound:
        q = qb_ref[0] + qb_ref[1] * jnp.tanh(q)

    o_ref[...] = q.astype(o_ref.dtype)


# ------------------------------ Forward (jitted) -----------------------------
def _pick_block_b(batch: int) -> int:
    # Whole batch in one block if small; otherwise 512-row tiles
    # (multiple of 8 sublanes, 128/256 MXU rows; VMEM per block << limits).
    return batch if batch <= 512 else 512


@functools.partial(jax.jit, static_argnames=("has_goal", "has_q_bound"))
def sac_critic_forward(params, qb, state, goal, action, *, has_goal, has_q_bound):
    state = state.astype(jnp.float32)
    action = action.astype(jnp.float32)
    if has_goal:
        x_parts = (state, goal.astype(jnp.float32), action)
    else:
        x_parts = (state, action)
    w1_parts = params["w1_parts"]
    num_parts = len(x_parts)

    batch = state.shape[0]
    tb = _pick_block_b(batch)
    grid = (pl.cdiv(batch, tb),)

    const2 = lambda i: (0, 0)
    batch_map = lambda i: (i, 0)

    in_specs = []
    args = []
    if has_q_bound:
        in_specs.append(pl.BlockSpec(memory_space=pltpu.MemorySpace.SMEM))
        args.append(qb)
    # Batch-tiled activations.
    in_specs += [pl.BlockSpec((tb, xp.shape[1]), batch_map) for xp in x_parts]
    args += list(x_parts)
    # Weights / biases: constant index_map -> DMA'd once, VMEM-resident.
    in_specs += [pl.BlockSpec(wp.shape, const2) for wp in w1_parts]
    args += list(w1_parts)
    for name in ("b1", "w2", "b2", "w3", "b3"):
        in_specs.append(pl.BlockSpec(params[name].shape, const2))
        args.append(params[name])

    kernel = functools.partial(_sac_critic_kernel,
                               num_parts=num_parts, has_q_bound=has_q_bound)

    return pl.pallas_call(
        kernel,
        out_shape=jax.ShapeDtypeStruct((batch, 1), jnp.float32),
        grid=grid,
        in_specs=in_specs,
        out_specs=pl.BlockSpec((tb, 1), batch_map),
        compiler_params=pltpu.CompilerParams(
            dimension_semantics=("parallel",)),
    )(*args)


# ------------------------------ Module wrapper --------------------------------
class SacCriticPallas:
    """JAX/Pallas equivalent of the PyTorch SacCritic module."""

    def __init__(self, state_size, goal_size, action_size,
                 q_bound_low, q_bound_high, key):
        self.state_size = state_size
        self.goal_size = goal_size
        self.action_size = action_size
        self.has_goal = goal_size > 0
        self.has_q_bound = q_bound_low is not None and q_bound_high is not None
        if self.has_q_bound:
            self.range = (q_bound_high - q_bound_low) / 2.0
            self.center = (q_bound_high + q_bound_low) / 2.0
            self.qb = jnp.array([self.center, self.range], jnp.float32)
        else:
            self.range = 0.0
            self.center = 0.0
            self.qb = None

        in_dim = state_size + goal_size + action_size

        def init_linear(kw, kb, fan_in, fan_out):
            # torch.nn.Linear default: U(-1/sqrt(fan_in), 1/sqrt(fan_in)).
            bound = 1.0 / (fan_in ** 0.5)
            w = jax.random.uniform(kw, (fan_in, fan_out), jnp.float32,
                                   minval=-bound, maxval=bound)
            b = jax.random.uniform(kb, (1, fan_out), jnp.float32,
                                   minval=-bound, maxval=bound)
            return w, b

        key, kw1, kb1, kw2, kb2, kw3, kb3 = jax.random.split(key, 7)
        w1, b1 = init_linear(kw1, kb1, in_dim, 256)
        w2, b2 = init_linear(kw2, kb2, 256, 256)
        w3, b3 = init_linear(kw3, kb3, 256, 1)

        # Split W1 row-wise so the concat can be fused into the kernel.
        if self.has_goal:
            w1_parts = (w1[:state_size],
                        w1[state_size:state_size + goal_size],
                        w1[state_size + goal_size:])
        else:
            w1_parts = (w1[:state_size], w1[state_size:])

        # NOTE: bf16 weights (f32 accumulate) are a further option for large,
        # compute-bound batches on v6e/v7x; kept f32 here for exact parity.
        self.params = {
            "w1_parts": w1_parts, "b1": b1,
            "w2": w2, "b2": b2,
            "w3": jnp.transpose(w3),   # (1, 256) row for the VPU reduce
            "b3": b3,                  # (1, 1)
        }

    def __call__(self, state, goal, action):
        return sac_critic_forward(
            self.params, self.qb, state,
            goal if self.has_goal else None, action,
            has_goal=self.has_goal, has_q_bound=self.has_q_bound)


# ------------------------------ Reference ------------------------------------
def _reference_forward(critic, state, goal, action):
    parts = [state, goal, action] if critic.has_goal else [state, action]
    x = jnp.concatenate([p.astype(jnp.float32) for p in parts], axis=-1)
    w1 = jnp.concatenate(critic.params["w1_parts"], axis=0)
    h1 = jnp.maximum(x @ w1 + critic.params["b1"], 0.0)
    h2 = jnp.maximum(h1 @ critic.params["w2"] + critic.params["b2"], 0.0)
    q = h2 @ critic.params["w3"].T + critic.params["b3"]
    if critic.has_q_bound:
        q = critic.center + critic.range * jnp.tanh(q)
    return q


if __name__ == "__main__":
    key = jax.random.PRNGKey(0)
    k_p1, k_s1, k_g1, k_a1, k_p2, k_s2, k_a2 = jax.random.split(key, 7)

    # --- Test 1: small batch, with goal, bounded Q (typical HAC-style). ---
    batch = 8
    state_size, goal_size, action_size = 10, 3, 4
    critic = SacCriticPallas(state_size, goal_size, action_size,
                             -20.0, 0.0, k_p1)
    state = jax.random.normal(k_s1, (batch, state_size), jnp.float32)
    goal = jax.random.normal(k_g1, (batch, goal_size), jnp.float32)
    action = jax.random.normal(k_a1, (batch, action_size), jnp.float32)

    out = jax.block_until_ready(critic(state, goal, action))
    ref = _reference_forward(critic, state, goal, action)
    assert out.shape == (batch, 1), out.shape
    assert jnp.allclose(out, ref, atol=1e-4, rtol=1e-4), (out, ref)

    # --- Test 2: no goal, unbounded Q, batch > tile (exercises the grid,
    #             parallel semantics and the ragged final block). ---
    batch2 = 600
    critic2 = SacCriticPallas(6, 0, 2, None, None, k_p2)
    state2 = jax.random.normal(k_s2, (batch2, 6), jnp.float32)
    action2 = jax.random.normal(k_a2, (batch2, 2), jnp.float32)

    out2 = jax.block_until_ready(critic2(state2, None, action2))
    ref2 = _reference_forward(critic2, state2, None, action2)
    assert out2.shape == (batch2, 1), out2.shape
    assert jnp.allclose(out2, ref2, atol=1e-4, rtol=1e-4)

    print("KERNEL_OK")
</pallas_src>

<mosaic_0001>
module attributes {stable_mosaic.version = 11 : i64} {
  func.func @_sac_critic_kernel(%arg0: i32, %arg1: memref<2xf32, #tpu.memory_space<smem>>, %arg2: memref<8x10xf32, #tpu.memory_space<vmem>>, %arg3: memref<8x3xf32, #tpu.memory_space<vmem>>, %arg4: memref<8x4xf32, #tpu.memory_space<vmem>>, %arg5: memref<10x256xf32, #tpu.memory_space<vmem>>, %arg6: memref<3x256xf32, #tpu.memory_space<vmem>>, %arg7: memref<4x256xf32, #tpu.memory_space<vmem>>, %arg8: memref<1x256xf32, #tpu.memory_space<vmem>>, %arg9: memref<256x256xf32, #tpu.memory_space<vmem>>, %arg10: memref<1x256xf32, #tpu.memory_space<vmem>>, %arg11: memref<1x256xf32, #tpu.memory_space<vmem>>, %arg12: memref<1x1xf32, #tpu.memory_space<vmem>>, %arg13: memref<8x1xf32, #tpu.memory_space<vmem>>) attributes {dimension_semantics = [#tpu.dimension_semantics<parallel>], iteration_bounds = array<i64: 1>, scalar_prefetch = 0 : i64, scratch_operands = 0 : i64, tpu.core_type = #tpu.core_type<tc>, window_params = [{transform_indices = @transform_0, window_bounds = array<i64: 2>}, {transform_indices = @transform_1, window_bounds = array<i64: 8, 10>}, {transform_indices = @transform_2, window_bounds = array<i64: 8, 3>}, {transform_indices = @transform_3, window_bounds = array<i64: 8, 4>}, {pipeline_mode = #tpu.pipeline_mode<synchronous>, transform_indices = @transform_4, window_bounds = array<i64: 10, 256>}, {pipeline_mode = #tpu.pipeline_mode<synchronous>, transform_indices = @transform_5, window_bounds = array<i64: 3, 256>}, {pipeline_mode = #tpu.pipeline_mode<synchronous>, transform_indices = @transform_6, window_bounds = array<i64: 4, 256>}, {pipeline_mode = #tpu.pipeline_mode<synchronous>, transform_indices = @transform_7, window_bounds = array<i64: 1, 256>}, {pipeline_mode = #tpu.pipeline_mode<synchronous>, transform_indices = @transform_8, window_bounds = array<i64: 256, 256>}, {pipeline_mode = #tpu.pipeline_mode<synchronous>, transform_indices = @transform_9, window_bounds = array<i64: 1, 256>}, {pipeline_mode = #tpu.pipeline_mode<synchronous>, transform_indices = @transform_10, window_bounds = array<i64: 1, 256>}, {pipeline_mode = #tpu.pipeline_mode<synchronous>, transform_indices = @transform_11, window_bounds = array<i64: 1, 1>}, {transform_indices = @transform_12, window_bounds = array<i64: 8, 1>}]} {
    %c0 = arith.constant 0 : index
    %c0_0 = arith.constant 0 : index
    %0 = vector.load %arg2[%c0, %c0_0] : memref<8x10xf32, #tpu.memory_space<vmem>>, vector<8x10xf32>
    %c0_1 = arith.constant 0 : index
    %c0_2 = arith.constant 0 : index
    %1 = vector.load %arg5[%c0_1, %c0_2] : memref<10x256xf32, #tpu.memory_space<vmem>>, vector<10x256xf32>
    %cst = arith.constant dense<0.000000e+00> : vector<8x256xf32>
    %2 = tpu.matmul %0, %1, %cst {dimension_numbers = #tpu.dot_dimension_numbers<[1], [0], [0], [1], [0, 0, 1, 1], [], []>} : vector<8x10xf32>, vector<10x256xf32>, vector<8x256xf32> -> vector<8x256xf32>
    %c0_3 = arith.constant 0 : index
    %c0_4 = arith.constant 0 : index
    %3 = vector.load %arg3[%c0_3, %c0_4] : memref<8x3xf32, #tpu.memory_space<vmem>>, vector<8x3xf32>
    %c0_5 = arith.constant 0 : index
    %c0_6 = arith.constant 0 : index
    %4 = vector.load %arg6[%c0_5, %c0_6] : memref<3x256xf32, #tpu.memory_space<vmem>>, vector<3x256xf32>
    %cst_7 = arith.constant dense<0.000000e+00> : vector<8x256xf32>
    %5 = tpu.matmul %3, %4, %cst_7 {dimension_numbers = #tpu.dot_dimension_numbers<[1], [0], [0], [1], [0, 0, 1, 1], [], []>} : vector<8x3xf32>, vector<3x256xf32>, vector<8x256xf32> -> vector<8x256xf32>
    %6 = arith.addf %2, %5 : vector<8x256xf32>
    %c0_8 = arith.constant 0 : index
    %c0_9 = arith.constant 0 : index
    %7 = vector.load %arg4[%c0_8, %c0_9] : memref<8x4xf32, #tpu.memory_space<vmem>>, vector<8x4xf32>
    %c0_10 = arith.constant 0 : index
    %c0_11 = arith.constant 0 : index
    %8 = vector.load %arg7[%c0_10, %c0_11] : memref<4x256xf32, #tpu.memory_space<vmem>>, vector<4x256xf32>
    %cst_12 = arith.constant dense<0.000000e+00> : vector<8x256xf32>
    %9 = tpu.matmul %7, %8, %cst_12 {dimension_numbers = #tpu.dot_dimension_numbers<[1], [0], [0], [1], [0, 0, 1, 1], [], []>} : vector<8x4xf32>, vector<4x256xf32>, vector<8x256xf32> -> vector<8x256xf32>
    %10 = arith.addf %6, %9 : vector<8x256xf32>
    %c0_13 = arith.constant 0 : index
    %c0_14 = arith.constant 0 : index
    %11 = vector.load %arg8[%c0_13, %c0_14] : memref<1x256xf32, #tpu.memory_space<vmem>>, vector<1x256xf32>
    %12 = vector.broadcast %11 : vector<1x256xf32> to vector<8x256xf32>
    %13 = arith.addf %10, %12 : vector<8x256xf32>
    %cst_15 = arith.constant 0.000000e+00 : f32
    %14 = vector.broadcast %cst_15 : f32 to vector<8x256xf32>
    %15 = arith.maximumf %13, %14 : vector<8x256xf32>
    %c0_16 = arith.constant 0 : index
    %c0_17 = arith.constant 0 : index
    %16 = vector.load %arg9[%c0_16, %c0_17] : memref<256x256xf32, #tpu.memory_space<vmem>>, vector<256x256xf32>
    %cst_18 = arith.constant dense<0.000000e+00> : vector<8x256xf32>
    %17 = tpu.matmul %15, %16, %cst_18 {dimension_numbers = #tpu.dot_dimension_numbers<[1], [0], [0], [1], [0, 0, 1, 1], [], []>} : vector<8x256xf32>, vector<256x256xf32>, vector<8x256xf32> -> vector<8x256xf32>
    %c0_19 = arith.constant 0 : index
    %c0_20 = arith.constant 0 : index
    %18 = vector.load %arg10[%c0_19, %c0_20] : memref<1x256xf32, #tpu.memory_space<vmem>>, vector<1x256xf32>
    %19 = vector.broadcast %18 : vector<1x256xf32> to vector<8x256xf32>
    %20 = arith.addf %17, %19 : vector<8x256xf32>
    %cst_21 = arith.constant 0.000000e+00 : f32
    %21 = vector.broadcast %cst_21 : f32 to vector<8x256xf32>
    %22 = arith.maximumf %20, %21 : vector<8x256xf32>
    %c0_22 = arith.constant 0 : index
    %c0_23 = arith.constant 0 : index
    %23 = vector.load %arg11[%c0_22, %c0_23] : memref<1x256xf32, #tpu.memory_space<vmem>>, vector<1x256xf32>
    %24 = vector.broadcast %23 : vector<1x256xf32> to vector<8x256xf32>
    %25 = arith.mulf %22, %24 : vector<8x256xf32>
    %cst_24 = arith.constant dense<0.000000e+00> : vector<8xf32>
    %26 = vector.multi_reduction <add>, %25, %cst_24 [1] : vector<8x256xf32> to vector<8xf32>
    %27 = vector.shape_cast %26 : vector<8xf32> to vector<8x1xf32>
    %c0_25 = arith.constant 0 : index
    %c0_26 = arith.constant 0 : index
    %28 = vector.load %arg12[%c0_25, %c0_26] : memref<1x1xf32, #tpu.memory_space<vmem>>, vector<1x1xf32>
    %29 = vector.broadcast %28 : vector<1x1xf32> to vector<8x1xf32>
    %30 = arith.addf %27, %29 : vector<8x1xf32>
    %c0_27 = arith.constant 0 : index
    %31 = memref.load %arg1[%c0_27] : memref<2xf32, #tpu.memory_space<smem>>
    %c1 = arith.constant 1 : index
    %32 = memref.load %arg1[%c1] : memref<2xf32, #tpu.memory_space<smem>>
    %33 = math.tanh %30 : vector<8x1xf32>
    %34 = vector.broadcast %32 : f32 to vector<8x1xf32>
    %35 = arith.mulf %34, %33 : vector<8x1xf32>
    %36 = vector.broadcast %31 : f32 to vector<8x1xf32>
    %37 = arith.addf %36, %35 : vector<8x1xf32>
    %c0_28 = arith.constant 0 : index
    %c0_29 = arith.constant 0 : index
    %38 = vector.load %arg13[%c0_28, %c0_29] : memref<8x1xf32, #tpu.memory_space<vmem>>, vector<8x1xf32>
    tpu.vector_store %arg13[%c0_28, %c0_29], %37 {strides = array<i32>} : memref<8x1xf32, #tpu.memory_space<vmem>>, vector<8x1xf32>,
    return
  }
  func.func @transform_0(%arg0: i32) -> i32 {
    %c0_i32 = arith.constant 0 : i32
    %c0_i32_0 = arith.constant 0 : i32
    return %c0_i32 : i32
  }
  func.func @transform_1(%arg0: i32) -> (i32, i32) {
    %c0_i32 = arith.constant 0 : i32
    %c0_i32_0 = arith.constant 0 : i32
    return %arg0, %c0_i32 : i32, i32
  }
  func.func @transform_2(%arg0: i32) -> (i32, i32) {
    %c0_i32 = arith.constant 0 : i32
    %c0_i32_0 = arith.constant 0 : i32
    return %arg0, %c0_i32 : i32, i32
  }
  func.func @transform_3(%arg0: i32) -> (i32, i32) {
    %c0_i32 = arith.constant 0 : i32
    %c0_i32_0 = arith.constant 0 : i32
    return %arg0, %c0_i32 : i32, i32
  }
  func.func @transform_4(%arg0: i32) -> (i32, i32) {
    %c0_i32 = arith.constant 0 : i32
    %c0_i32_0 = arith.constant 0 : i32
    %c0_i32_1 = arith.constant 0 : i32
    return %c0_i32, %c0_i32_0 : i32, i32
  }
  func.func @transform_5(%arg0: i32) -> (i32, i32) {
    %c0_i32 = arith.constant 0 : i32
    %c0_i32_0 = arith.constant 0 : i32
    %c0_i32_1 = arith.constant 0 : i32
    return %c0_i32, %c0_i32_0 : i32, i32
  }
  func.func @transform_6(%arg0: i32) -> (i32, i32) {
    %c0_i32 = arith.constant 0 : i32
    %c0_i32_0 = arith.constant 0 : i32
    %c0_i32_1 = arith.constant 0 : i32
    return %c0_i32, %c0_i32_0 : i32, i32
  }
  func.func @transform_7(%arg0: i32) -> (i32, i32) {
    %c0_i32 = arith.constant 0 : i32
    %c0_i32_0 = arith.constant 0 : i32
    %c0_i32_1 = arith.constant 0 : i32
    return %c0_i32, %c0_i32_0 : i32, i32
  }
  func.func @transform_8(%arg0: i32) -> (i32, i32) {
    %c0_i32 = arith.constant 0 : i32
    %c0_i32_0 = arith.constant 0 : i32
    %c0_i32_1 = arith.constant 0 : i32
    return %c0_i32, %c0_i32_0 : i32, i32
  }
  func.func @transform_9(%arg0: i32) -> (i32, i32) {
    %c0_i32 = arith.constant 0 : i32
    %c0_i32_0 = arith.constant 0 : i32
    %c0_i32_1 = arith.constant 0 : i32
    return %c0_i32, %c0_i32_0 : i32, i32
  }
  func.func @transform_10(%arg0: i32) -> (i32, i32) {
    %c0_i32 = arith.constant 0 : i32
    %c0_i32_0 = arith.constant 0 : i32
    %c0_i32_1 = arith.constant 0 : i32
    return %c0_i32, %c0_i32_0 : i32, i32
  }
  func.func @transform_11(%arg0: i32) -> (i32, i32) {
    %c0_i32 = arith.constant 0 : i32
    %c0_i32_0 = arith.constant 0 : i32
    %c0_i32_1 = arith.constant 0 : i32
    return %c0_i32, %c0_i32_0 : i32, i32
  }
  func.func @transform_12(%arg0: i32) -> (i32, i32) {
    %c0_i32 = arith.constant 0 : i32
    %c0_i32_0 = arith.constant 0 : i32
    return %arg0, %c0_i32 : i32, i32
  }
}

</mosaic_0001>

<llo_original>
// kernel: sac_critic_forward.1
$region0: #{sac_critic_forward.1}
  #allocation0 [shape = 'u32[]', space=smem, size = 0x4, offset = 0x4, fixed_abs, tag = 'smem constant byte address 0x4 - core index']
  #allocation1 [shape = 'u32[144,128]{1,0:T(1,128)}', space=vmem, size = 0x12000, scoped, tag = 'internal scratch']
  #allocation2 [shape = 'f32[1,1]{1,0:T(1,128)S(1)}', space=vmem, size = 0x200, scoped, tag = 'scoped memory for sac_critic_forward.1']
  %s0 = inlined_call_operand.vmem [shape: f32[2], index: 0, kind: input, shape index: {}]
  %s1 = inlined_call_operand.vmem [shape: f32[8,10], index: 1, kind: input, shape index: {}]
  %s2 = inlined_call_operand.vmem [shape: f32[8,3], index: 2, kind: input, shape index: {}]
  %s3 = inlined_call_operand.vmem [shape: f32[8,4], index: 3, kind: input, shape index: {}]
  %s4 = inlined_call_operand.vmem [shape: f32[10,256], index: 4, kind: input, shape index: {}]
  %s5 = inlined_call_operand.hbm [shape: f32[3,256], index: 5, kind: input, shape index: {}]
  %s6 = inlined_call_operand.hbm [shape: f32[4,256], index: 6, kind: input, shape index: {}]
  %s7 = inlined_call_operand.vmem [shape: f32[1,256], index: 7, kind: input, shape index: {}]
  %s8 = inlined_call_operand.hbm [shape: f32[256,256], index: 8, kind: input, shape index: {}]
  %s9 = inlined_call_operand.hbm [shape: f32[1,256], index: 9, kind: input, shape index: {}]
  %s10 = inlined_call_operand.hbm [shape: f32[1,256], index: 10, kind: input, shape index: {}]
  %s11 = inlined_call_operand.<no memory space> [shape: f32[1,1], index: 11, kind: input, shape index: {}]
  %s12 = inlined_call_operand.vmem [shape: f32[8,1], index: 12, kind: output, shape index: {}]
  %s13 = sld [smem:[#allocation0]]
  $region82: #{sac_critic_forward.1} parent=0
    _
  %s15 = ssub.s32 1, %s13
  %s16 = scalar_select 0, %s15, %s13
  %v17 = vstv %s11
  %18 = vst [vmem:[#allocation2] sm:$0x1] %v17
  $region1: #{sac_critic_forward.1} parent=0
    #allocation3 [shape = 'u8[512]{0}', space=smem, size = 0x200, scoped, tag = 'input window, operand 0, single buffered']
    #allocation4 [shape = 's32[1]{0}', space=sflag, size = 0x4, scoped, tag = 'scoped memory for sac_critic_forward.1']
    #allocation5 [shape = 's32[1]{0}', space=sflag, size = 0x4, scoped, tag = 'scoped memory for sac_critic_forward.1']
    #allocation6 [shape = 'u8[4096]{0}', space=vmem, size = 0x1000, scoped, tag = 'input window, operand 5, single buffered']
    #allocation7 [shape = 'u8[4096]{0}', space=vmem, size = 0x1000, scoped, tag = 'input window, operand 6, single buffered']
    #allocation8 [shape = 's32[1]{0}', space=sflag, size = 0x4, scoped, tag = 'scoped memory for sac_critic_forward.1']
    #allocation9 [shape = 'u8[262144]{0}', space=vmem, size = 0x40000, scoped, tag = 'input window, operand 8, single buffered']
    #allocation10 [shape = 'u8[1024]{0}', space=vmem, size = 0x400, scoped, tag = 'input window, operand 9, single buffered']
    #allocation11 [shape = 's32[1]{0}', space=sflag, size = 0x4, scoped, tag = 'scoped memory for sac_critic_forward.1']
    #allocation12 [shape = 'u8[1024]{0}', space=vmem, size = 0x400, scoped, tag = 'input window, operand 10, single buffered']
    %19 = vsyncpa [#allocation5], 0
    %20 = vsyncpa [#allocation4], 0
    %21 = vsyncpa [#allocation8], 0
    %22 = vsyncpa [#allocation11], 0
    // Predicated region
    $region2: #{sac_critic_forward.1} parent=1 // pred_check
      _
    $region3: #{sac_critic_forward.1} parent=1 // pred_check_branch
      %24 = sbr.rel (0) target = $region5
    $region4: #{sac_critic_forward.1} parent=1 // pred_region
      %s26 = ssub.s32 16, 16
      %27 = vsyncadd [#allocation5], %s26
      %s29 = sshll.u32 %s0, 4
      %s30 = int_to_ptr.vmem [resolvable:$true] %s29
      %32 = dma.vmem_to_smem %s30, 16, [#allocation3], [#allocation5]
    $region5: #{sac_critic_forward.1} parent=1 // pred_fallthru
      _
    // Predicated region
    $region6: #{sac_critic_forward.1} parent=1 // pred_check
      _
    $region7: #{sac_critic_forward.1} parent=1 // pred_check_branch
      %34 = sbr.rel (0) target = $region9
    $region8: #{sac_critic_forward.1} parent=1 // pred_region
      _
    $region9: #{sac_critic_forward.1} parent=1 // pred_fallthru
      _
    // Predicated region
    $region10: #{sac_critic_forward.1} parent=1 // pred_check
      _
    $region11: #{sac_critic_forward.1} parent=1 // pred_check_branch
      %36 = sbr.rel (0) target = $region13
    $region12: #{sac_critic_forward.1} parent=1 // pred_region
      _
    $region13: #{sac_critic_forward.1} parent=1 // pred_fallthru
      _
    // Predicated region
    $region14: #{sac_critic_forward.1} parent=1 // pred_check
      _
    $region15: #{sac_critic_forward.1} parent=1 // pred_check_branch
      %38 = sbr.rel (0) target = $region17
    $region16: #{sac_critic_forward.1} parent=1 // pred_region
      _
    $region17: #{sac_critic_forward.1} parent=1 // pred_fallthru
      _
    // Predicated region
    $region18: #{sac_critic_forward.1} parent=1 // pred_check
      _
    $region19: #{sac_critic_forward.1} parent=1 // pred_check_branch
      %40 = sbr.rel (0) target = $region21
    $region20: #{sac_critic_forward.1} parent=1 // pred_region
      _
    $region21: #{sac_critic_forward.1} parent=1 // pred_fallthru
      _
    // Predicated region
    $region22: #{sac_critic_forward.1} parent=1 // pred_check
      _
    $region23: #{sac_critic_forward.1} parent=1 // pred_check_branch
      %42 = sbr.rel (0) target = $region25
    $region24: #{sac_critic_forward.1} parent=1 // pred_region
      %s44 = ssub.s32 128, 128
      %45 = vsyncadd [#allocation4], %s44
      %s47 = sshll.u32 [#allocation6], 4
      %s48 = int_to_ptr.vmem [resolvable:$true] %s47
      %50 = dma.hbm_to_vmem [thread:$0]  %s5, 128, %s48, [#allocation4]
    $region25: #{sac_critic_forward.1} parent=1 // pred_fallthru
      _
    // Predicated region
    $region26: #{sac_critic_forward.1} parent=1 // pred_check
      _
    $region27: #{sac_critic_forward.1} parent=1 // pred_check_branch
      %52 = sbr.rel (0) target = $region29
    $region28: #{sac_critic_forward.1} parent=1 // pred_region
      %s54 = ssub.s32 128, 128
      %55 = vsyncadd [#allocation8], %s54
      %s57 = sshll.u32 [#allocation7], 4
      %s58 = int_to_ptr.vmem [resolvable:$true] %s57
      %60 = dma.hbm_to_vmem [thread:$0]  %s6, 128, %s58, [#allocation8]
    $region29: #{sac_critic_forward.1} parent=1 // pred_fallthru
      _
    // Predicated region
    $region30: #{sac_critic_forward.1} parent=1 // pred_check
      _
    $region31: #{sac_critic_forward.1} parent=1 // pred_check_branch
      %62 = sbr.rel (0) target = $region33
    $region32: #{sac_critic_forward.1} parent=1 // pred_region
      _
    $region33: #{sac_critic_forward.1} parent=1 // pred_fallthru
      _
    // Predicated region
    $region34: #{sac_critic_forward.1} parent=1 // pred_check
      _
    $region35: #{sac_critic_forward.1} parent=1 // pred_check_branch
      %64 = sbr.rel (0) target = $region37
    $region36: #{sac_critic_forward.1} parent=1 // pred_region
      %s66 = ssub.s32 8192, 8192
      %67 = vsyncadd [#allocation8], %s66
      %s68 = sshll.u32 [#allocation9], 4
      %s69 = int_to_ptr.vmem [resolvable:$true] %s68
      %74 = dma.hbm_to_vmem [thread:$0]  %s8, 8192, %s69, [#allocation8], 256, 256, 16
    $region37: #{sac_critic_forward.1} parent=1 // pred_fallthru
      _
    // Predicated region
    $region38: #{sac_critic_forward.1} parent=1 // pred_check
      _
    $region39: #{sac_critic_forward.1} parent=1 // pred_check_branch
      %76 = sbr.rel (0) target = $region41
    $region40: #{sac_critic_forward.1} parent=1 // pred_region
      %s78 = ssub.s32 32, 32
      %79 = vsyncadd [#allocation11], %s78
      %s81 = sshll.u32 [#allocation10], 4
      %s82 = int_to_ptr.vmem [resolvable:$true] %s81
      %84 = dma.hbm_to_vmem [thread:$0]  %s9, 32, %s82, [#allocation11]
    $region41: #{sac_critic_forward.1} parent=1 // pred_fallthru
      _
    // Predicated region
    $region42: #{sac_critic_forward.1} parent=1 // pred_check
      _
    $region43: #{sac_critic_forward.1} parent=1 // pred_check_branch
      %86 = sbr.rel (0) target = $region45
    $region44: #{sac_critic_forward.1} parent=1 // pred_region
      %s88 = ssub.s32 32, 32
      %89 = vsyncadd [#allocation11], %s88
      %s91 = sshll.u32 [#allocation12], 4
      %s92 = int_to_ptr.vmem [resolvable:$true] %s91
      %94 = dma.hbm_to_vmem [thread:$0]  %s10, 32, %s92, [#allocation11]
    $region45: #{sac_critic_forward.1} parent=1 // pred_fallthru
      _
    // Predicated region
    $region46: #{sac_critic_forward.1} parent=1 // pred_check
      _
    $region47: #{sac_critic_forward.1} parent=1 // pred_check_branch
      %96 = sbr.rel (0) target = $region49
    $region48: #{sac_critic_forward.1} parent=1 // pred_region
      _
    $region49: #{sac_critic_forward.1} parent=1 // pred_fallthru
      _
    // Predicated region
    $region50: #{sac_critic_forward.1} parent=1 // pred_check
      _
    $region51: #{sac_critic_forward.1} parent=1 // pred_check_branch
      %98 = sbr.rel (0) target = $region53
    $region52: #{sac_critic_forward.1} parent=1 // pred_region
      %99 = dma.done [#allocation5], 16
    $region53: #{sac_critic_forward.1} parent=1 // pred_fallthru
      _
    // Predicated region
    $region54: #{sac_critic_forward.1} parent=1 // pred_check
      _
    $region55: #{sac_critic_forward.1} parent=1 // pred_check_branch
      %101 = sbr.rel (0) target = $region57
    $region56: #{sac_critic_forward.1} parent=1 // pred_region
      %102 = dma.done [#allocation4], 128
    $region57: #{sac_critic_forward.1} parent=1 // pred_fallthru
      _
    // Predicated region
    $region58: #{sac_critic_forward.1} parent=1 // pred_check
      _
    $region59: #{sac_critic_forward.1} parent=1 // pred_check_branch
      %104 = sbr.rel (0) target = $region61
    $region60: #{sac_critic_forward.1} parent=1 // pred_region
      %105 = dma.done [#allocation8], 128
    $region61: #{sac_critic_forward.1} parent=1 // pred_fallthru
      _
    // Predicated region
    $region62: #{sac_critic_forward.1} parent=1 // pred_check
      _
    $region63: #{sac_critic_forward.1} parent=1 // pred_check_branch
      %107 = sbr.rel (0) target = $region65
    $region64: #{sac_critic_forward.1} parent=1 // pred_region
      %108 = dma.done [#allocation8], 8192
    $region65: #{sac_critic_forward.1} parent=1 // pred_fallthru
      _
    // Predicated region
    $region66: #{sac_critic_forward.1} parent=1 // pred_check
      _
    $region67: #{sac_critic_forward.1} parent=1 // pred_check_branch
      %110 = sbr.rel (0) target = $region69
    $region68: #{sac_critic_forward.1} parent=1 // pred_region
      %111 = dma.done [#allocation11], 32
    $region69: #{sac_critic_forward.1} parent=1 // pred_fallthru
      _
    // Predicated region
    $region70: #{sac_critic_forward.1} parent=1 // pred_check
      _
    $region71: #{sac_critic_forward.1} parent=1 // pred_check_branch
      %113 = sbr.rel (0) target = $region73
    $region72: #{sac_critic_forward.1} parent=1 // pred_region
      %114 = dma.done [#allocation11], 32
    $region73: #{sac_critic_forward.1} parent=1 // pred_fallthru
      _
    %115 = sfence
    %v116 = vld [vmem:[%s1] sm:$0xff]
    %v117 = vld [vmem:[%s4] sm:$0xff]
    %v118 = vld [vmem:[%s4 + $0x8] sm:$0xff]
    %v119 = vld [vmem:[%s4 + $0x10] sm:$0x3]
    %v120 = vld [vmem:[%s4 + $0x18] sm:$0x3]
    %v121 = vld [vmem:[%s2] sm:$0xff]
    %v122 = vld [vmem:[#allocation6] sm:$0x77]
    %v124 = vcombine.high %v122, %v122
    %vm125 = vcmask 23552
    %v127 = vsel %vm125, %v121, 0
    %vm129 = vcmask 1042432
    %v130 = vsel %vm129, %v122, 0
    %v132 = vsel %vm129, %v124, 0
    %134 = vmatprep.subr.mxu0 %v132
    %135 = vmatpush1.msra.mxu0 %v130
    %136 = vmatprep.subr.mxu0 0.0
    %137 = vmatpush1.msra.mxu0 0.0
    %138 = vmatprep.subr.mxu0 0.0
    %139 = vmatpush1.msra.mxu0 0.0
    %140 = vmatprep.subr.mxu0 0.0
    %141 = vmatpush1.msra.mxu0 0.0
    %142 = vmatprep.subr.mxu0 0.0
    %143 = vmatpush1.msra.mxu0 0.0
    %144 = vmatprep.subr.mxu0 0.0
    %145 = vmatpush1.msra.mxu0 0.0
    %146 = vmatprep.subr.mxu0 0.0
    %147 = vmatpush1.msra.mxu0 0.0
    %148 = vmatprep.subr.mxu0 0.0
    %149 = vmatpush1.msra.mxu0 0.0
    %150 = vmatprep.subr.mxu0 0.0
    %151 = vmatpush1.msra.mxu0 0.0
    %152 = vmatprep.subr.mxu0 0.0
    %153 = vmatpush1.msra.mxu0 0.0
    %154 = vmatprep.subr.mxu0 0.0
    %155 = vmatpush1.msra.mxu0 0.0
    %156 = vmatprep.subr.mxu0 0.0
    %157 = vmatpush1.msra.mxu0 0.0
    %158 = vmatprep.subr.mxu0 0.0
    %159 = vmatpush1.msra.mxu0 0.0
    %160 = vmatprep.subr.mxu0 0.0
    %161 = vmatpush1.msra.mxu0 0.0
    %162 = vmatprep.subr.mxu0 0.0
    %163 = vmatpush1.msra.mxu0 0.0
    %164 = vmatprep.subr.mxu0 0.0
    %165 = vmatpush1.msra.mxu0 0.0
    %166 = vmatprep.subr.mxu0 0.0
    %167 = vmatpush1.msra.mxu0 0.0
    %168 = vmatprep.subr.mxu0 0.0
    %169 = vmatpush1.msra.mxu0 0.0
    %170 = vmatprep.subr.mxu0 0.0
    %171 = vmatpush1.msra.mxu0 0.0
    %172 = vmatprep.subr.mxu0 0.0
    %173 = vmatpush1.msra.mxu0 0.0
    %174 = vmatprep.subr.mxu0 0.0
    %175 = vmatpush1.msra.mxu0 0.0
    %176 = vmatprep.subr.mxu0 0.0
    %177 = vmatpush1.msra.mxu0 0.0
    %178 = vmatprep.subr.mxu0 0.0
    %179 = vmatpush1.msra.mxu0 0.0
    %180 = vmatprep.subr.mxu0 0.0
    %181 = vmatpush1.msra.mxu0 0.0
    %182 = vmatprep.subr.mxu0 0.0
    %183 = vmatpush1.msra.mxu0 0.0
    %184 = vmatprep.subr.mxu0 0.0
    %185 = vmatpush1.msra.mxu0 0.0
    %186 = vmatprep.subr.mxu0 0.0
    %187 = vmatpush1.msra.mxu0 0.0
    %188 = vmatprep.subr.mxu0 0.0
    %189 = vmatpush1.msra.mxu0 0.0
    %190 = vmatprep.subr.mxu0 0.0
    %191 = vmatpush1.msra.mxu0 0.0
    %192 = vmatprep.subr.mxu0 0.0
    %193 = vmatpush1.msra.mxu0 0.0
    %194 = vmatprep.subr.mxu0 0.0
    %195 = vmatpush1.msra.mxu0 0.0
    %196 = vmatprep.subr.mxu0 0.0
    %197 = vmatpush1.msra.mxu0 0.0
    %198 = vmatprep.mubr.f32.mxu0 0.0
    %199 = vmatmul.mubr.f32.gmra.mrb[0].mxu0 %v127
    %v200 = vpop.f32.mrb[0].mxu0
    %v201 = vadd.f32 0.0, %v200
    %v202 = vpop.f32.mrb[0].mxu0
    %v203 = vadd.f32 0.0, %v202
    %204 = vdwg.mxu0
    %vm205 = vcmask 80896
    %v207 = vsel %vm205, %v116, 0
    %vm209 = vcmask 1041408
    %v211 = vsel %vm209, %v119, 0
    %v214 = vsel %vm209, %v120, 0
    %216 = vmatprep.subr.mxu0 %v118
    %217 = vmatpush1.msra.mxu0 %v117
    %218 = vmatprep.subr.mxu0 %v214
    %219 = vmatpush1.msra.mxu0 %v211
    %220 = vmatprep.subr.mxu0 0.0
    %221 = vmatpush1.msra.mxu0 0.0
    %222 = vmatprep.subr.mxu0 0.0
    %223 = vmatpush1.msra.mxu0 0.0
    %224 = vmatprep.subr.mxu0 0.0
    %225 = vmatpush1.msra.mxu0 0.0
    %226 = vmatprep.subr.mxu0 0.0
    %227 = vmatpush1.msra.mxu0 0.0
    %228 = vmatprep.subr.mxu0 0.0
    %229 = vmatpush1.msra.mxu0 0.0
    %230 = vmatprep.subr.mxu0 0.0
    %231 = vmatpush1.msra.mxu0 0.0
    %232 = vmatprep.subr.mxu0 0.0
    %233 = vmatpush1.msra.mxu0 0.0
    %234 = vmatprep.subr.mxu0 0.0
    %235 = vmatpush1.msra.mxu0 0.0
    %236 = vmatprep.subr.mxu0 0.0
    %237 = vmatpush1.msra.mxu0 0.0
    %238 = vmatprep.subr.mxu0 0.0
    %239 = vmatpush1.msra.mxu0 0.0
    %240 = vmatprep.subr.mxu0 0.0
    %241 = vmatpush1.msra.mxu0 0.0
    %242 = vmatprep.subr.mxu0 0.0
    %243 = vmatpush1.msra.mxu0 0.0
    %244 = vmatprep.subr.mxu0 0.0
    %245 = vmatpush1.msra.mxu0 0.0
    %246 = vmatprep.subr.mxu0 0.0
    %247 = vmatpush1.msra.mxu0 0.0
    %248 = vmatprep.subr.mxu0 0.0
    %249 = vmatpush1.msra.mxu0 0.0
    %250 = vmatprep.subr.mxu0 0.0
    %251 = vmatpush1.msra.mxu0 0.0
    %252 = vmatprep.subr.mxu0 0.0
    %253 = vmatpush1.msra.mxu0 0.0
    %254 = vmatprep.subr.mxu0 0.0
    %255 = vmatpush1.msra.mxu0 0.0
    %256 = vmatprep.subr.mxu0 0.0
    %257 = vmatpush1.msra.mxu0 0.0
    %258 = vmatprep.subr.mxu0 0.0
    %259 = vmatpush1.msra.mxu0 0.0
    %260 = vmatprep.subr.mxu0 0.0
    %261 = vmatpush1.msra.mxu0 0.0
    %262 = vmatprep.subr.mxu0 0.0
    %263 = vmatpush1.msra.mxu0 0.0
    %264 = vmatprep.subr.mxu0 0.0
    %265 = vmatpush1.msra.mxu0 0.0
    %266 = vmatprep.subr.mxu0 0.0
    %267 = vmatpush1.msra.mxu0 0.0
    %268 = vmatprep.subr.mxu0 0.0
    %269 = vmatpush1.msra.mxu0 0.0
    %270 = vmatprep.subr.mxu0 0.0
    %271 = vmatpush1.msra.mxu0 0.0
    %272 = vmatprep.subr.mxu0 0.0
    %273 = vmatpush1.msra.mxu0 0.0
    %274 = vmatprep.subr.mxu0 0.0
    %275 = vmatpush1.msra.mxu0 0.0
    %276 = vmatprep.subr.mxu0 0.0
    %277 = vmatpush1.msra.mxu0 0.0
    %278 = vmatprep.subr.mxu0 0.0
    %279 = vmatpush1.msra.mxu0 0.0
    %280 = vmatprep.mubr.f32.mxu0 0.0
    %281 = vmatmul.mubr.f32.gmra.mrb[0].mxu0 %v207
    %v282 = vpop.f32.mrb[0].mxu0
    %v283 = vadd.f32 %v201, %v282
    %v284 = vpop.f32.mrb[0].mxu0
    %v285 = vadd.f32 %v203, %v284
    %286 = vdwg.mxu0
    %v287 = vld [vmem:[%s3] sm:$0xff]
    %v288 = vld [vmem:[#allocation7] sm:$0xff]
    %v290 = vcombine.high %v288, %v288
    %vm291 = vcmask 31744
    %v293 = vsel %vm291, %v287, 0
    %vm295 = vcmask 1043456
    %v296 = vsel %vm295, %v288, 0
    %v298 = vsel %vm295, %v290, 0
    %300 = vmatprep.subr.mxu0 %v298
    %301 = vmatpush1.msra.mxu0 %v296
    %302 = vmatprep.subr.mxu0 0.0
    %303 = vmatpush1.msra.mxu0 0.0
    %304 = vmatprep.subr.mxu0 0.0
    %305 = vmatpush1.msra.mxu0 0.0
    %306 = vmatprep.subr.mxu0 0.0
    %307 = vmatpush1.msra.mxu0 0.0
    %308 = vmatprep.subr.mxu0 0.0
    %309 = vmatpush1.msra.mxu0 0.0
    %310 = vmatprep.subr.mxu0 0.0
    %311 = vmatpush1.msra.mxu0 0.0
    %312 = vmatprep.subr.mxu0 0.0
    %313 = vmatpush1.msra.mxu0 0.0
    %314 = vmatprep.subr.mxu0 0.0
    %315 = vmatpush1.msra.mxu0 0.0
    %316 = vmatprep.subr.mxu0 0.0
    %317 = vmatpush1.msra.mxu0 0.0
    %318 = vmatprep.subr.mxu0 0.0
    %319 = vmatpush1.msra.mxu0 0.0
    %320 = vmatprep.subr.mxu0 0.0
    %321 = vmatpush1.msra.mxu0 0.0
    %322 = vmatprep.subr.mxu0 0.0
    %323 = vmatpush1.msra.mxu0 0.0
    %324 = vmatprep.subr.mxu0 0.0
    %325 = vmatpush1.msra.mxu0 0.0
    %326 = vmatprep.subr.mxu0 0.0
    %327 = vmatpush1.msra.mxu0 0.0
    %328 = vmatprep.subr.mxu0 0.0
    %329 = vmatpush1.msra.mxu0 0.0
    %330 = vmatprep.subr.mxu0 0.0
    %331 = vmatpush1.msra.mxu0 0.0
    %332 = vmatprep.subr.mxu0 0.0
    %333 = vmatpush1.msra.mxu0 0.0
    %334 = vmatprep.subr.mxu0 0.0
    %335 = vmatpush1.msra.mxu0 0.0
    %336 = vmatprep.subr.mxu0 0.0
    %337 = vmatpush1.msra.mxu0 0.0
    %338 = vmatprep.subr.mxu0 0.0
    %339 = vmatpush1.msra.mxu0 0.0
    %340 = vmatprep.subr.mxu0 0.0
    %341 = vmatpush1.msra.mxu0 0.0
    %342 = vmatprep.subr.mxu0 0.0
    %343 = vmatpush1.msra.mxu0 0.0
    %344 = vmatprep.subr.mxu0 0.0
    %345 = vmatpush1.msra.mxu0 0.0
    %346 = vmatprep.subr.mxu0 0.0
    %347 = vmatpush1.msra.mxu0 0.0
    %348 = vmatprep.subr.mxu0 0.0
    %349 = vmatpush1.msra.mxu0 0.0
    %350 = vmatprep.subr.mxu0 0.0
    %351 = vmatpush1.msra.mxu0 0.0
    %352 = vmatprep.subr.mxu0 0.0
    %353 = vmatpush1.msra.mxu0 0.0
    %354 = vmatprep.subr.mxu0 0.0
    %355 = vmatpush1.msra.mxu0 0.0
    %356 = vmatprep.subr.mxu0 0.0
    %357 = vmatpush1.msra.mxu0 0.0
    %358 = vmatprep.subr.mxu0 0.0
    %359 = vmatpush1.msra.mxu0 0.0
    %360 = vmatprep.subr.mxu0 0.0
    %361 = vmatpush1.msra.mxu0 0.0
    %362 = vmatprep.subr.mxu0 0.0
    %363 = vmatpush1.msra.mxu0 0.0
    %364 = vmatprep.mubr.f32.mxu0 0.0
    %365 = vmatmul.mubr.f32.gmra.mrb[0].mxu0 %v293
    %v366 = vpop.f32.mrb[0].mxu0
    %v367 = vadd.f32 0.0, %v366
    %v368 = vpop.f32.mrb[0].mxu0
    %v369 = vadd.f32 0.0, %v368
    %370 = vdwg.mxu0
    %v371 = vadd.f32 %v283, %v367
    %v372 = vadd.f32 %v285, %v369
    %v373 = vld [vmem:[%s7] sm:$0x3]
    %v375 = vlaneseq
    %v376 = vshrl.u32 %v375, 7
    %v377 = vsub.s32 0, %v376
    %v378 = vrot.slane %v373, %v377
    %v379 = vlaneseq
    %v380 = vshrl.u32 %v379, 7
    %v381 = vsub.s32 1, %v380
    %v382 = vrot.slane %v373, %v381
    %v385 = vadd.f32 %v371, %v378
    %v386 = vadd.f32 %v372, %v382
    %v387 = vmax.f32 %v385, 0.0
    %v388 = vmax.f32 %v386, 0.0
    %v389 = vld [vmem:[#allocation9] sm:$0xff]
    %v390 = vld [vmem:[#allocation9 + $0x8] sm:$0xff]
    %v391 = vld [vmem:[#allocation9 + $0x10] sm:$0xff]
    %v392 = vld [vmem:[#allocation9 + $0x18] sm:$0xff]
    %v393 = vld [vmem:[#allocation9 + $0x20] sm:$0xff]
    %v394 = vld [vmem:[#allocation9 + $0x28] sm:$0xff]
    %v395 = vld [vmem:[#allocation9 + $0x30] sm:$0xff]
    %v396 = vld [vmem:[#allocation9 + $0x38] sm:$0xff]
    %v397 = vld [vmem:[#allocation9 + $0x40] sm:$0xff]
    %v398 = vld [vmem:[#allocation9 + $0x48] sm:$0xff]
    %v399 = vld [vmem:[#allocation9 + $0x50] sm:$0xff]
    %v400 = vld [vmem:[#allocation9 + $0x58] sm:$0xff]
    %v401 = vld [vmem:[#allocation9 + $0x60] sm:$0xff]
    %v402 = vld [vmem:[#allocation9 + $0x68] sm:$0xff]
    %v403 = vld [vmem:[#allocation9 + $0x70] sm:$0xff]
    %v404 = vld [vmem:[#allocation9 + $0x78] sm:$0xff]
    %v405 = vld [vmem:[#allocation9 + $0x80] sm:$0xff]
    %v406 = vld [vmem:[#allocation9 + $0x88] sm:$0xff]
    %v407 = vld [vmem:[#allocation9 + $0x90] sm:$0xff]
    %v408 = vld [vmem:[#allocation9 + $0x98] sm:$0xff]
    %v409 = vld [vmem:[#allocation9 + $0xa0] sm:$0xff]
    %v410 = vld [vmem:[#allocation9 + $0xa8] sm:$0xff]
    %v411 = vld [vmem:[#allocation9 + $0xb0] sm:$0xff]
    %v412 = vld [vmem:[#allocation9 + $0xb8] sm:$0xff]
    %v413 = vld [vmem:[#allocation9 + $0xc0] sm:$0xff]
    %v414 = vld [vmem:[#allocation9 + $0xc8] sm:$0xff]
    %v415 = vld [vmem:[#allocation9 + $0xd0] sm:$0xff]
    %v416 = vld [vmem:[#allocation9 + $0xd8] sm:$0xff]
    %v417 = vld [vmem:[#allocation9 + $0xe0] sm:$0xff]
    %v418 = vld [vmem:[#allocation9 + $0xe8] sm:$0xff]
    %v419 = vld [vmem:[#allocation9 + $0xf0] sm:$0xff]
    %v420 = vld [vmem:[#allocation9 + $0xf8] sm:$0xff]
    %v421 = vld [vmem:[#allocation9 + $0x100] sm:$0xff]
    %v422 = vld [vmem:[#allocation9 + $0x108] sm:$0xff]
    %v423 = vld [vmem:[#allocation9 + $0x110] sm:$0xff]
    %v424 = vld [vmem:[#allocation9 + $0x118] sm:$0xff]
    %v425 = vld [vmem:[#allocation9 + $0x120] sm:$0xff]
    %v426 = vld [vmem:[#allocation9 + $0x128] sm:$0xff]
    %v427 = vld [vmem:[#allocation9 + $0x130] sm:$0xff]
    %v428 = vld [vmem:[#allocation9 + $0x138] sm:$0xff]
    %v429 = vld [vmem:[#allocation9 + $0x140] sm:$0xff]
    %v430 = vld [vmem:[#allocation9 + $0x148] sm:$0xff]
    %v431 = vld [vmem:[#allocation9 + $0x150] sm:$0xff]
    %v432 = vld [vmem:[#allocation9 + $0x158] sm:$0xff]
    %v433 = vld [vmem:[#allocation9 + $0x160] sm:$0xff]
    %v434 = vld [vmem:[#allocation9 + $0x168] sm:$0xff]
    %v435 = vld [vmem:[#allocation9 + $0x170] sm:$0xff]
    %v436 = vld [vmem:[#allocation9 + $0x178] sm:$0xff]
    %v437 = vld [vmem:[#allocation9 + $0x180] sm:$0xff]
    %v438 = vld [vmem:[#allocation9 + $0x188] sm:$0xff]
    %v439 = vld [vmem:[#allocation9 + $0x190] sm:$0xff]
    %v440 = vld [vmem:[#allocation9 + $0x198] sm:$0xff]
    %v441 = vld [vmem:[#allocation9 + $0x1a0] sm:$0xff]
    %v442 = vld [vmem:[#allocation9 + $0x1a8] sm:$0xff]
    %v443 = vld [vmem:[#allocation9 + $0x1b0] sm:$0xff]
    %v444 = vld [vmem:[#allocation9 + $0x1b8] sm:$0xff]
    %v445 = vld [vmem:[#allocation9 + $0x1c0] sm:$0xff]
    %v446 = vld [vmem:[#allocation9 + $0x1c8] sm:$0xff]
    %v447 = vld [vmem:[#allocation9 + $0x1d0] sm:$0xff]
    %v448 = vld [vmem:[#allocation9 + $0x1d8] sm:$0xff]
    %v449 = vld [vmem:[#allocation9 + $0x1e0] sm:$0xff]
    %v450 = vld [vmem:[#allocation9 + $0x1e8] sm:$0xff]
    %v451 = vld [vmem:[#allocation9 + $0x1f0] sm:$0xff]
    %v452 = vld [vmem:[#allocation9 + $0x1f8] sm:$0xff]
    %v453 = vld [vmem:[#allocation10] sm:$0x3]
    %v455 = vlaneseq
    %v456 = vshrl.u32 %v455, 7
    %v457 = vsub.s32 0, %v456
    %v458 = vrot.slane %v453, %v457
    %v459 = vlaneseq
    %v460 = vshrl.u32 %v459, 7
    %v461 = vsub.s32 1, %v460
    %v462 = vrot.slane %v453, %v461
    %465 = vmatprep.subr.mxu0 %v390
    %466 = vmatpush1.msra.mxu0 %v389
    %467 = vmatprep.subr.mxu0 %v392
    %468 = vmatpush1.msra.mxu0 %v391
    %469 = vmatprep.subr.mxu0 %v394
    %470 = vmatpush1.msra.mxu0 %v393
    %471 = vmatprep.subr.mxu0 %v396
    %472 = vmatpush1.msra.mxu0 %v395
    %473 = vmatprep.subr.mxu0 %v398
    %474 = vmatpush1.msra.mxu0 %v397
    %475 = vmatprep.subr.mxu0 %v400
    %476 = vmatpush1.msra.mxu0 %v399
    %477 = vmatprep.subr.mxu0 %v402
    %478 = vmatpush1.msra.mxu0 %v401
    %479 = vmatprep.subr.mxu0 %v404
    %480 = vmatpush1.msra.mxu0 %v403
    %481 = vmatprep.subr.mxu0 %v406
    %482 = vmatpush1.msra.mxu0 %v405
    %483 = vmatprep.subr.mxu0 %v408
    %484 = vmatpush1.msra.mxu0 %v407
    %485 = vmatprep.subr.mxu0 %v410
    %486 = vmatpush1.msra.mxu0 %v409
    %487 = vmatprep.subr.mxu0 %v412
    %488 = vmatpush1.msra.mxu0 %v411
    %489 = vmatprep.subr.mxu0 %v414
    %490 = vmatpush1.msra.mxu0 %v413
    %491 = vmatprep.subr.mxu0 %v416
    %492 = vmatpush1.msra.mxu0 %v415
    %493 = vmatprep.subr.mxu0 %v418
    %494 = vmatpush1.msra.mxu0 %v417
    %495 = vmatprep.subr.mxu0 %v420
    %496 = vmatpush1.msra.mxu0 %v419
    %497 = vmatprep.subr.mxu0 %v422
    %498 = vmatpush1.msra.mxu0 %v421
    %499 = vmatprep.subr.mxu0 %v424
    %500 = vmatpush1.msra.mxu0 %v423
    %501 = vmatprep.subr.mxu0 %v426
    %502 = vmatpush1.msra.mxu0 %v425
    %503 = vmatprep.subr.mxu0 %v428
    %504 = vmatpush1.msra.mxu0 %v427
    %505 = vmatprep.subr.mxu0 %v430
    %506 = vmatpush1.msra.mxu0 %v429
    %507 = vmatprep.subr.mxu0 %v432
    %508 = vmatpush1.msra.mxu0 %v431
    %509 = vmatprep.subr.mxu0 %v434
    %510 = vmatpush1.msra.mxu0 %v433
    %511 = vmatprep.subr.mxu0 %v436
    %512 = vmatpush1.msra.mxu0 %v435
    %513 = vmatprep.subr.mxu0 %v438
    %514 = vmatpush1.msra.mxu0 %v437
    %515 = vmatprep.subr.mxu0 %v440
    %516 = vmatpush1.msra.mxu0 %v439
    %517 = vmatprep.subr.mxu0 %v442
    %518 = vmatpush1.msra.mxu0 %v441
    %519 = vmatprep.subr.mxu0 %v444
    %520 = vmatpush1.msra.mxu0 %v443
    %521 = vmatprep.subr.mxu0 %v446
    %522 = vmatpush1.msra.mxu0 %v445
    %523 = vmatprep.subr.mxu0 %v448
    %524 = vmatpush1.msra.mxu0 %v447
    %525 = vmatprep.subr.mxu0 %v450
    %526 = vmatpush1.msra.mxu0 %v449
    %527 = vmatprep.subr.mxu0 %v452
    %528 = vmatpush1.msra.mxu0 %v451
    %529 = vmatprep.mubr.f32.mxu0 %v388
    %530 = vmatmul.mubr.f32.gmra.mrb[0].mxu0 %v387
    %v531 = vpop.f32.mrb[0].mxu0
    %v532 = vadd.f32 %v458, %v531
    %v533 = vpop.f32.mrb[0].mxu0
    %v534 = vadd.f32 %v462, %v533
    %535 = vdwg.mxu0
    %v536 = vmax.f32 %v532, 0.0
    %v537 = vmax.f32 %v534, 0.0
    %v538 = vld [vmem:[#allocation12] sm:$0x3]
    %v540 = vlaneseq
    %v541 = vshrl.u32 %v540, 7
    %v542 = vsub.s32 0, %v541
    %v543 = vrot.slane %v538, %v542
    %v544 = vlaneseq
    %v545 = vshrl.u32 %v544, 7
    %v546 = vsub.s32 1, %v545
    %v547 = vrot.slane %v538, %v546
    %v550 = vmul.f32 %v536, %v543
    %v551 = vmul.f32 %v537, %v547
    %v552 = vadd.f32 %v550, %v551
    %553 = vadd.xlane.f32.xlu0 %v552
    %v554 = vpop.xlane.xlu0 %553
    %v555 = vld [vmem:[#allocation2] sm:$0x1]
    %v557 = vlaneseq
    %v558 = vshrl.u32 %v557, 7
    %v559 = vsub.s32 0, %v558
    %v560 = vrot.slane %v555, %v559
    %v562 = vadd.f32 %v554, %v560
    %s563 = sld [smem:[#allocation3]]
    %s564 = sld [smem:[#allocation3 + $0x1]]
    %v565 = vtanh.pop %v562
    %v566 = vstv %s564
    %v567 = vmul.f32 %v566, %v565
    %v568 = vstv %s563
    %v569 = vadd.f32 %v568, %v567
    %vm570 = vcmask 7168
    %571 = vst.msk [vmem:[%s12] sm:$0xff] %vm570, %v569
    // Predicated region
    $region74: #{sac_critic_forward.1} parent=1 // pred_check
      _
    $region75: #{sac_critic_forward.1} parent=1 // pred_check_branch
      %573 = sbr.rel (0) target = $region77
    $region76: #{sac_critic_forward.1} parent=1 // pred_region
      _
    $region77: #{sac_critic_forward.1} parent=1 // pred_fallthru
      _
    // Predicated region
    $region78: #{sac_critic_forward.1} parent=1 // pred_check
      _
    $region79: #{sac_critic_forward.1} parent=1 // pred_check_branch
      %575 = sbr.rel (0) target = $region81
    $region80: #{sac_critic_forward.1} parent=1 // pred_region
      _
    $region81: #{sac_critic_forward.1} parent=1 // pred_fallthru
      _
    %576 = vsyncpa [#allocation4], 1
    %577 = vsyncpa [#allocation8], 1
    %578 = vsyncpa [#allocation11], 1
    %579 = vsyncpa [#allocation5], 1

</llo_original>
